<compile_context>
chip_gen: v7x
topology: tpu7x:2x2x1
jax: 0.10.0
libtpu: 0.0.40
codegen_flags: <defaults>
</compile_context>

<pallas_src>
import jax
import jax.numpy as jnp
from jax import lax
from jax.experimental import pallas as pl
from jax.experimental.pallas import tpu as pltpu

CHANNEL = 32    # q/k input dim
CHANNEL2 = 64   # k output dim / v input dim


def _round_up(n, m):
    return ((n + m - 1) // m) * m


def _vmem_cap_bytes():
    # ~75% of the physical per-core VMEM, leaving compiler headroom.
    try:
        cap = int(pltpu.get_tpu_info().vmem_capacity_bytes)
    except Exception:
        cap = 64 * 1024 * 1024
    if cap <= 0:
        cap = 64 * 1024 * 1024
    return cap * 3 // 4


def _vmem_limit(needed_bytes):
    return int(min(_vmem_cap_bytes(), max(16 * 1024 * 1024, 4 * int(needed_bytes))))


def _choose_tile_b(batch, size_out, itemsize):
    """Batch-tile rows: large for HBM bandwidth, sublane-aligned, but with at
    least 4 grid steps (when the batch allows) so v7x's two TensorCores each
    get >= 2 pipelined steps under dimension_semantics=("parallel",)."""
    budget = _vmem_cap_bytes() // 3                 # x + out double-buffered + slack
    per_row = 2 * 2 * size_out * itemsize           # 2 arrays x 2 buffers
    max_rows = max(8, budget // max(per_row, 1))
    tile = min(1024, max_rows, _round_up(batch, 8))
    if batch >= 32 and pl.cdiv(batch, tile) < 4:
        tile = pl.cdiv(batch, 4)
    return max(8, _round_up(tile, 8))


def _weight_factors(qw_ref, kw_ref, vw_ref, ww_ref):
    """S = softmax(q @ k.T / 64, axis=1)  and  P = w.T @ v, both in f32."""
    qw = qw_ref[...].astype(jnp.float32)
    kw = kw_ref[...].astype(jnp.float32)
    vw = vw_ref[...].astype(jnp.float32)
    ww = ww_ref[...].astype(jnp.float32)

    scores = lax.dot_general(                       # q @ k.T (no explicit transpose)
        qw, kw, dimension_numbers=(((1,), (1,)), ((), ())),
        preferred_element_type=jnp.float32) * (1.0 / kw_ref.shape[0])
    m = jnp.max(scores, axis=1, keepdims=True)
    e = jnp.exp(scores - m)
    s = e / jnp.sum(e, axis=1, keepdims=True)       # exact division (off hot path)

    p = lax.dot_general(                            # w.T @ v (contract dim 0 of both)
        ww, vw, dimension_numbers=(((0,), (0,)), ((), ())),
        preferred_element_type=jnp.float32)
    return s, p


def _fused_kernel(x_ref, qw_ref, kw_ref, vw_ref, ww_ref, o_ref):
    """Per batch tile: recompute D.T = P @ S.T (tiny, hides under x DMA) and
    do a single K=N=size_out MXU matmul."""
    s, p = _weight_factors(qw_ref, kw_ref, vw_ref, ww_ref)
    d_t = lax.dot_general(p, s, dimension_numbers=(((1,), (1,)), ((), ())),
                          preferred_element_type=jnp.float32)
    o = jnp.dot(x_ref[...], d_t.astype(x_ref.dtype),
                preferred_element_type=jnp.float32)
    o_ref[...] = o.astype(o_ref.dtype)


def _prep_kernel(qw_ref, kw_ref, vw_ref, ww_ref, s_ref, p_ref):
    s, p = _weight_factors(qw_ref, kw_ref, vw_ref, ww_ref)
    s_ref[...] = s
    p_ref[...] = p


def _apply_factored_kernel(x_ref, p_ref, s_ref, o_ref):
    """Per batch tile: out = (x @ P) @ S.T (FLOP-saving form for big size_out)."""
    z = jnp.dot(x_ref[...].astype(jnp.float32), p_ref[...],
                preferred_element_type=jnp.float32)
    o = lax.dot_general(z, s_ref[...], dimension_numbers=(((1,), (1,)), ((), ())),
                        preferred_element_type=jnp.float32)
    o_ref[...] = o.astype(o_ref.dtype)


def attention_layer(x, q_w, k_w, v_w, w_w, *, tile_b=None):
    """Forward pass of AttentionLayer.

    x:   (..., size_out)
    q_w: (size_out, 32)   k_w: (64, 32)
    v_w: (size_out, 64)   w_w: (size_out, size_out)
    """
    size_out = w_w.shape[0]
    assert q_w.shape == (size_out, CHANNEL)
    assert k_w.shape == (CHANNEL2, CHANNEL)
    assert v_w.shape == (size_out, CHANNEL2)
    assert w_w.shape == (size_out, size_out)
    assert x.shape[-1] == size_out, "x's last dim must equal size_out"

    orig_ndim = x.ndim
    orig_shape = x.shape
    x2 = x if orig_ndim == 2 else x.reshape(-1, size_out)
    batch = x2.shape[0]
    itemsize = jnp.dtype(x2.dtype).itemsize

    if tile_b is None:
        tile_b = _choose_tile_b(batch, size_out, itemsize)
    tile_b = max(8, _round_up(min(int(tile_b), _round_up(batch, 8)), 8))
    grid = (pl.cdiv(batch, tile_b),)

    x_spec = pl.BlockSpec((tile_b, size_out), lambda i: (i, 0))
    out_spec = pl.BlockSpec((tile_b, size_out), lambda i: (i, 0))
    resident = lambda shape: pl.BlockSpec(shape, lambda i: (0, 0))  # DMA'd once

    weight_bytes = (q_w.size + k_w.size + v_w.size + w_w.size) * 4
    tile_bytes = 2 * 2 * tile_b * size_out * itemsize   # x + out, double-buffered

    if size_out <= 2 * CHANNEL2:
        # ---------------- fully fused single launch --------------------------
        flops = (2 * batch * size_out * size_out
                 + grid[0] * 2 * size_out * CHANNEL2 * (CHANNEL + 2 * size_out))
        cost = pl.CostEstimate(
            flops=int(flops),
            transcendentals=int(grid[0] * size_out * CHANNEL2),
            bytes_accessed=int(2 * batch * size_out * itemsize + weight_bytes))
        out = pl.pallas_call(
            _fused_kernel,
            out_shape=jax.ShapeDtypeStruct((batch, size_out), x2.dtype),
            grid=grid,
            in_specs=[
                x_spec,
                resident((size_out, CHANNEL)),
                resident((CHANNEL2, CHANNEL)),
                resident((size_out, CHANNEL2)),
                resident((size_out, size_out)),
            ],
            out_specs=out_spec,
            compiler_params=pltpu.CompilerParams(
                dimension_semantics=("parallel",),
                vmem_limit_bytes=_vmem_limit(
                    tile_bytes + weight_bytes + 2 * size_out * size_out * 4)),
            cost_estimate=cost,
        )(x2, q_w, k_w, v_w, w_w)
    else:
        # ---------------- factored two-stage path (size_out > 2*CHANNEL2) ----
        # TODO(synk): for size_out >~ 4K (f32) w_w no longer fits v7x VMEM; the
        # P = w.T @ v reduction should then be blocked over rows of w_w.
        vmem_full = pl.BlockSpec(memory_space=pltpu.MemorySpace.VMEM)
        s_fac, p_fac = pl.pallas_call(
            _prep_kernel,
            out_shape=(jax.ShapeDtypeStruct((size_out, CHANNEL2), jnp.float32),
                       jax.ShapeDtypeStruct((size_out, CHANNEL2), jnp.float32)),
            in_specs=[vmem_full] * 4,
            out_specs=(vmem_full, vmem_full),
            compiler_params=pltpu.CompilerParams(
                vmem_limit_bytes=_vmem_limit(
                    weight_bytes + 4 * size_out * CHANNEL2 * 4)),
        )(q_w, k_w, v_w, w_w)

        fac_bytes = 2 * size_out * CHANNEL2 * 4
        cost = pl.CostEstimate(
            flops=int(4 * batch * size_out * CHANNEL2),
            transcendentals=0,
            bytes_accessed=int(2 * batch * size_out * itemsize + fac_bytes))
        out = pl.pallas_call(
            _apply_factored_kernel,
            out_shape=jax.ShapeDtypeStruct((batch, size_out), x2.dtype),
            grid=grid,
            in_specs=[
                x_spec,
                resident((size_out, CHANNEL2)),   # P (resident, f32)
                resident((size_out, CHANNEL2)),   # S (resident, f32)
            ],
            out_specs=out_spec,
            compiler_params=pltpu.CompilerParams(
                dimension_semantics=("parallel",),
                vmem_limit_bytes=_vmem_limit(tile_bytes + 2 * fac_bytes)),
            cost_estimate=cost,
        )(x2, p_fac, s_fac)

    if orig_ndim != 2:
        out = out.reshape(orig_shape[:-1] + (size_out,))
    return out


def _reference(x, q_w, k_w, v_w, w_w):
    scores = (q_w @ k_w.T) / k_w.shape[0]
    s = jax.nn.softmax(scores, axis=1)
    attn = s @ v_w.T
    d = attn @ w_w
    return x @ d.T


if __name__ == "__main__":
    key = jax.random.PRNGKey(0)

    # ---- case 1: size_out=128 (fused single-matmul path), B multiple of tile
    size_out, batch = 128, 256
    kx, kq, kk, kv, kw, key = jax.random.split(key, 6)
    x   = jax.random.normal(kx, (batch, size_out), dtype=jnp.float32)
    q_w = jax.random.normal(kq, (size_out, CHANNEL), dtype=jnp.float32) * 0.1
    k_w = jax.random.normal(kk, (CHANNEL2, CHANNEL), dtype=jnp.float32) * 0.1
    v_w = jax.random.normal(kv, (size_out, CHANNEL2), dtype=jnp.float32) * 0.1
    w_w = jax.random.normal(kw, (size_out, size_out), dtype=jnp.float32) * 0.1

    out = jax.block_until_ready(attention_layer(x, q_w, k_w, v_w, w_w))
    ref = _reference(x, q_w, k_w, v_w, w_w)
    assert out.shape == (batch, size_out)
    assert jnp.allclose(out, ref, atol=1e-3, rtol=1e-3), "fused path mismatch"

    # ---- case 2: size_out=256 (factored two-stage path), ragged batch -------
    size_out2, batch2 = 256, 100
    kx2, kq2, kk2, kv2, kw2, key = jax.random.split(key, 6)
    x2   = jax.random.normal(kx2, (batch2, size_out2), dtype=jnp.float32)
    q_w2 = jax.random.normal(kq2, (size_out2, CHANNEL), dtype=jnp.float32) * 0.1
    k_w2 = jax.random.normal(kk2, (CHANNEL2, CHANNEL), dtype=jnp.float32) * 0.1
    v_w2 = jax.random.normal(kv2, (size_out2, CHANNEL2), dtype=jnp.float32) * 0.1
    w_w2 = jax.random.normal(kw2, (size_out2, size_out2), dtype=jnp.float32) * 0.1

    out2 = jax.block_until_ready(attention_layer(x2, q_w2, k_w2, v_w2, w_w2))
    ref2 = _reference(x2, q_w2, k_w2, v_w2, w_w2)
    assert out2.shape == (batch2, size_out2)
    assert jnp.allclose(out2, ref2, atol=1e-3, rtol=1e-3), "factored path mismatch"

    print("KERNEL_OK")
</pallas_src>

<mosaic_0001>
module attributes {stable_mosaic.version = 11 : i64} {
  func.func @_fused_kernel(%arg0: i32, %arg1: memref<64x128xf32, #tpu.memory_space<vmem>>, %arg2: memref<128x32xf32, #tpu.memory_space<vmem>>, %arg3: memref<64x32xf32, #tpu.memory_space<vmem>>, %arg4: memref<128x64xf32, #tpu.memory_space<vmem>>, %arg5: memref<128x128xf32, #tpu.memory_space<vmem>>, %arg6: memref<64x128xf32, #tpu.memory_space<vmem>>) attributes {dimension_semantics = [#tpu.dimension_semantics<parallel>], iteration_bounds = array<i64: 4>, scalar_prefetch = 0 : i64, scratch_operands = 0 : i64, tpu.core_type = #tpu.core_type<tc>, window_params = [{transform_indices = @transform_0, window_bounds = array<i64: 64, 128>}, {pipeline_mode = #tpu.pipeline_mode<synchronous>, transform_indices = @transform_1, window_bounds = array<i64: 128, 32>}, {pipeline_mode = #tpu.pipeline_mode<synchronous>, transform_indices = @transform_2, window_bounds = array<i64: 64, 32>}, {pipeline_mode = #tpu.pipeline_mode<synchronous>, transform_indices = @transform_3, window_bounds = array<i64: 128, 64>}, {pipeline_mode = #tpu.pipeline_mode<synchronous>, transform_indices = @transform_4, window_bounds = array<i64: 128, 128>}, {transform_indices = @transform_5, window_bounds = array<i64: 64, 128>}]} {
    %c0 = arith.constant 0 : index
    %c0_0 = arith.constant 0 : index
    %0 = vector.load %arg2[%c0, %c0_0] : memref<128x32xf32, #tpu.memory_space<vmem>>, vector<128x32xf32>
    %c0_1 = arith.constant 0 : index
    %c0_2 = arith.constant 0 : index
    %1 = vector.load %arg3[%c0_1, %c0_2] : memref<64x32xf32, #tpu.memory_space<vmem>>, vector<64x32xf32>
    %c0_3 = arith.constant 0 : index
    %c0_4 = arith.constant 0 : index
    %2 = vector.load %arg4[%c0_3, %c0_4] : memref<128x64xf32, #tpu.memory_space<vmem>>, vector<128x64xf32>
    %c0_5 = arith.constant 0 : index
    %c0_6 = arith.constant 0 : index
    %3 = vector.load %arg5[%c0_5, %c0_6] : memref<128x128xf32, #tpu.memory_space<vmem>>, vector<128x128xf32>
    %cst = arith.constant dense<0.000000e+00> : vector<128x64xf32>
    %4 = tpu.matmul %0, %1, %cst {dimension_numbers = #tpu.dot_dimension_numbers<[1], [1], [0], [0], [0, 0, 1, 0], [], []>} : vector<128x32xf32>, vector<64x32xf32>, vector<128x64xf32> -> vector<128x64xf32>
    %cst_7 = arith.constant 1.562500e-02 : f32
    %5 = vector.broadcast %cst_7 : f32 to vector<128x64xf32>
    %6 = arith.mulf %4, %5 : vector<128x64xf32>
    %cst_8 = arith.constant dense<0xFF800000> : vector<128xf32>
    %7 = vector.multi_reduction <maximumf>, %6, %cst_8 [1] : vector<128x64xf32> to vector<128xf32>
    %8 = vector.shape_cast %7 : vector<128xf32> to vector<128x1xf32>
    %9 = vector.broadcast %8 : vector<128x1xf32> to vector<128x64xf32>
    %10 = arith.subf %6, %9 : vector<128x64xf32>
    %11 = math.exp %10 : vector<128x64xf32>
    %cst_9 = arith.constant dense<0.000000e+00> : vector<128xf32>
    %12 = vector.multi_reduction <add>, %11, %cst_9 [1] : vector<128x64xf32> to vector<128xf32>
    %13 = vector.shape_cast %12 : vector<128xf32> to vector<128x1xf32>
    %14 = vector.broadcast %13 : vector<128x1xf32> to vector<128x64xf32>
    %15 = arith.divf %11, %14 : vector<128x64xf32>
    %cst_10 = arith.constant dense<0.000000e+00> : vector<128x64xf32>
    %16 = tpu.matmul %3, %2, %cst_10 {dimension_numbers = #tpu.dot_dimension_numbers<[0], [0], [1], [1], [0, 1, 1, 1], [], []>} : vector<128x128xf32>, vector<128x64xf32>, vector<128x64xf32> -> vector<128x64xf32>
    %cst_11 = arith.constant dense<0.000000e+00> : vector<128x128xf32>
    %17 = tpu.matmul %16, %15, %cst_11 {dimension_numbers = #tpu.dot_dimension_numbers<[1], [1], [0], [0], [0, 0, 1, 0], [], []>} : vector<128x64xf32>, vector<128x64xf32>, vector<128x128xf32> -> vector<128x128xf32>
    %c0_12 = arith.constant 0 : index
    %c0_13 = arith.constant 0 : index
    %18 = vector.load %arg1[%c0_12, %c0_13] : memref<64x128xf32, #tpu.memory_space<vmem>>, vector<64x128xf32>
    %cst_14 = arith.constant dense<0.000000e+00> : vector<64x128xf32>
    %19 = tpu.matmul %18, %17, %cst_14 {dimension_numbers = #tpu.dot_dimension_numbers<[1], [0], [0], [1], [0, 0, 1, 1], [], []>} : vector<64x128xf32>, vector<128x128xf32>, vector<64x128xf32> -> vector<64x128xf32>
    %c0_15 = arith.constant 0 : index
    %c0_16 = arith.constant 0 : index
    %20 = vector.load %arg6[%c0_15, %c0_16] : memref<64x128xf32, #tpu.memory_space<vmem>>, vector<64x128xf32>
    tpu.vector_store %arg6[%c0_15, %c0_16], %19 {strides = array<i32>} : memref<64x128xf32, #tpu.memory_space<vmem>>, vector<64x128xf32>,
    return
  }
  func.func @transform_0(%arg0: i32) -> (i32, i32) {
    %c0_i32 = arith.constant 0 : i32
    %c0_i32_0 = arith.constant 0 : i32
    return %arg0, %c0_i32 : i32, i32
  }
  func.func @transform_1(%arg0: i32) -> (i32, i32) {
    %c0_i32 = arith.constant 0 : i32
    %c0_i32_0 = arith.constant 0 : i32
    %c0_i32_1 = arith.constant 0 : i32
    return %c0_i32, %c0_i32_0 : i32, i32
  }
  func.func @transform_2(%arg0: i32) -> (i32, i32) {
    %c0_i32 = arith.constant 0 : i32
    %c0_i32_0 = arith.constant 0 : i32
    %c0_i32_1 = arith.constant 0 : i32
    return %c0_i32, %c0_i32_0 : i32, i32
  }
  func.func @transform_3(%arg0: i32) -> (i32, i32) {
    %c0_i32 = arith.constant 0 : i32
    %c0_i32_0 = arith.constant 0 : i32
    %c0_i32_1 = arith.constant 0 : i32
    return %c0_i32, %c0_i32_0 : i32, i32
  }
  func.func @transform_4(%arg0: i32) -> (i32, i32) {
    %c0_i32 = arith.constant 0 : i32
    %c0_i32_0 = arith.constant 0 : i32
    %c0_i32_1 = arith.constant 0 : i32
    return %c0_i32, %c0_i32_0 : i32, i32
  }
  func.func @transform_5(%arg0: i32) -> (i32, i32) {
    %c0_i32 = arith.constant 0 : i32
    %c0_i32_0 = arith.constant 0 : i32
    return %arg0, %c0_i32 : i32, i32
  }
}

</mosaic_0001>

<llo_original>
// kernel: tpu_custom_call.1
$region0: #{tpu_custom_call.1}
  #allocation0 [shape = 'u32[]', space=smem, size = 0x4, offset = 0x4, fixed_abs, tag = 'smem constant byte address 0x4 - core index']
  #allocation1 [shape = 'u32[144,128]{1,0:T(1,128)}', space=vmem, size = 0x12000, scoped, tag = 'internal scratch']
  %s0 = inlined_call_operand.vmem [shape: f32[256,128], index: 0, kind: input, shape index: {}]
  %s1 = inlined_call_operand.vmem [shape: f32[128,32], index: 1, kind: input, shape index: {}]
  %s2 = inlined_call_operand.vmem [shape: f32[64,32], index: 2, kind: input, shape index: {}]
  %s3 = inlined_call_operand.vmem [shape: f32[128,64], index: 3, kind: input, shape index: {}]
  %s4 = inlined_call_operand.vmem [shape: f32[128,128], index: 4, kind: input, shape index: {}]
  %s5 = inlined_call_operand.hbm [shape: f32[256,128], index: 5, kind: output, shape index: {}]
  %s6 = sld [smem:[#allocation0]]
  $region53: #{tpu_custom_call.1} parent=0
    _
  %s8 = ssub.s32 1, %s6
  %s9 = scalar_select 0, %s8, %s6
  $region1: #{tpu_custom_call.1} parent=0
    #allocation2 [shape = 'u8[65536]{0}', space=vmem, size = 0x10000, scoped, tag = 'output window, operand 0']
    #allocation3 [shape = 's32[2]{0}', space=sflag, size = 0x8, scoped, tag = 'scoped memory for tpu_custom_call.1']
    %10 = vsyncpa [#allocation3], 0
    %s11 = scalar_lea.sflag [#allocation3], 1
    %12 = vsyncpa %s11, 0
    loop: start=0, step=1, limit=6
    $region2: #{tpu_custom_call.1} parent=1 // loop_pre_header
      _
    $region3: #{tpu_custom_call.1} parent=1 // loop_header
      %s14 = sphi 0, %s18
      %p15 = scmp.ge.s32.totalorder %s14, 6
      %s24 = sphi 0, %s26
      %s27 = sphi 0, %s24
      %s28 = sphi 0, %s27
      %s44 = sphi 0, %s28
      %s48 = sphi 0, %s48
      %s50 = sphi 0, %s48
      %s51 = sphi 0, %s50
      %s65 = sphi 0, %s51
      %s69 = sphi 0, %s69
      %s71 = sphi 0, %s69
      %s72 = sphi 0, %s71
      %s86 = sphi 0, %s72
      %s90 = sphi 0, %s90
      %s92 = sphi 0, %s90
      %s93 = sphi 0, %s92
      %s107 = sphi 0, %s93
      %s111 = sphi 0, %s111
      %s113 = sphi 0, %s111
      %s114 = sphi 0, %s113
      %s128 = sphi 0, %s114
      %s134 = sphi 0, %s136
      %s137 = sphi 0, %s134
      %s138 = sphi 0, %s137
      %s154 = sphi 0, %s138
    $region4: #{tpu_custom_call.1} parent=1 // loop_header_branch
      %17 = sbr.rel (%p15) target = $region8
    $region5: #{tpu_custom_call.1} parent=1 // loop_body
      %s19 = ssub.s32 %s14, 1
      %s20 = ssub.s32 %s14, 2
      %s21 = sadd.s32 %s14, 1
      %s22 = ssub.s32 %s14, %s21
      %p23 = scmp.eq.s32.totalorder %s22, 0
      %s25 = sadd.s32 %s24, 1
      %s26 = scalar_select %p23, %s24, %s25
      %p29 = pneg %p23
      %p30 = scmp.eq.s32.totalorder %s14, 3
      %p31 = por %p29, %p30
      %p32 = scmp.ne.s32.totalorder %s24, %s27
      %p33 = scmp.eq.s32.totalorder %s14, 0
      %p34 = por %p32, %p33
      %p35 = scmp.ne.s32.totalorder %s24, %s27
      %p36 = scmp.eq.s32.totalorder %s19, 3
      %p37 = por %p35, %p36
      %p38 = scmp.ne.s32.totalorder %s27, %s28
      %p39 = scmp.eq.s32.totalorder %s19, 0
      %p40 = por %p38, %p39
      %p41 = scmp.ne.s32.totalorder %s27, %s28
      %p42 = scmp.eq.s32.totalorder %s20, 3
      %p43 = por %p41, %p42
      %p45 = scmp.ne.s32.totalorder %s28, %s44
      %p46 = scmp.eq.s32.totalorder %s20, 0
      %p47 = por %p45, %p46
      %s49 = sadd.s32 %s48, 1
      %p52 = scmp.eq.s32.totalorder %s14, 3
      %p53 = scmp.ne.s32.totalorder %s48, %s50
      %p54 = scmp.eq.s32.totalorder %s14, 0
      %p55 = por %p53, %p54
      %p56 = scmp.ne.s32.totalorder %s48, %s50
      %p57 = scmp.eq.s32.totalorder %s19, 3
      %p58 = por %p56, %p57
      %p59 = scmp.ne.s32.totalorder %s50, %s51
      %p60 = scmp.eq.s32.totalorder %s19, 0
      %p61 = por %p59, %p60
      %p62 = scmp.ne.s32.totalorder %s50, %s51
      %p63 = scmp.eq.s32.totalorder %s20, 3
      %p64 = por %p62, %p63
      %p66 = scmp.ne.s32.totalorder %s51, %s65
      %p67 = scmp.eq.s32.totalorder %s20, 0
      %p68 = por %p66, %p67
      %s70 = sadd.s32 %s69, 1
      %p73 = scmp.eq.s32.totalorder %s14, 3
      %p74 = scmp.ne.s32.totalorder %s69, %s71
      %p75 = scmp.eq.s32.totalorder %s14, 0
      %p76 = por %p74, %p75
      %p77 = scmp.ne.s32.totalorder %s69, %s71
      %p78 = scmp.eq.s32.totalorder %s19, 3
      %p79 = por %p77, %p78
      %p80 = scmp.ne.s32.totalorder %s71, %s72
      %p81 = scmp.eq.s32.totalorder %s19, 0
      %p82 = por %p80, %p81
      %p83 = scmp.ne.s32.totalorder %s71, %s72
      %p84 = scmp.eq.s32.totalorder %s20, 3
      %p85 = por %p83, %p84
      %p87 = scmp.ne.s32.totalorder %s72, %s86
      %p88 = scmp.eq.s32.totalorder %s20, 0
      %p89 = por %p87, %p88
      %s91 = sadd.s32 %s90, 1
      %p94 = scmp.eq.s32.totalorder %s14, 3
      %p95 = scmp.ne.s32.totalorder %s90, %s92
      %p96 = scmp.eq.s32.totalorder %s14, 0
      %p97 = por %p95, %p96
      %p98 = scmp.ne.s32.totalorder %s90, %s92
      %p99 = scmp.eq.s32.totalorder %s19, 3
      %p100 = por %p98, %p99
      %p101 = scmp.ne.s32.totalorder %s92, %s93
      %p102 = scmp.eq.s32.totalorder %s19, 0
      %p103 = por %p101, %p102
      %p104 = scmp.ne.s32.totalorder %s92, %s93
      %p105 = scmp.eq.s32.totalorder %s20, 3
      %p106 = por %p104, %p105
      %p108 = scmp.ne.s32.totalorder %s93, %s107
      %p109 = scmp.eq.s32.totalorder %s20, 0
      %p110 = por %p108, %p109
      %s112 = sadd.s32 %s111, 1
      %p115 = scmp.eq.s32.totalorder %s14, 3
      %p116 = scmp.ne.s32.totalorder %s111, %s113
      %p117 = scmp.eq.s32.totalorder %s14, 0
      %p118 = por %p116, %p117
      %p119 = scmp.ne.s32.totalorder %s111, %s113
      %p120 = scmp.eq.s32.totalorder %s19, 3
      %p121 = por %p119, %p120
      %p122 = scmp.ne.s32.totalorder %s113, %s114
      %p123 = scmp.eq.s32.totalorder %s19, 0
      %p124 = por %p122, %p123
      %p125 = scmp.ne.s32.totalorder %s113, %s114
      %p126 = scmp.eq.s32.totalorder %s20, 3
      %p127 = por %p125, %p126
      %p129 = scmp.ne.s32.totalorder %s114, %s128
      %p130 = scmp.eq.s32.totalorder %s20, 0
      %p131 = por %p129, %p130
      %s132 = ssub.s32 %s14, %s21
      %p133 = scmp.eq.s32.totalorder %s132, 0
      %s135 = sadd.s32 %s134, 1
      %s136 = scalar_select %p133, %s134, %s135
      %p139 = pneg %p133
      %p140 = scmp.eq.s32.totalorder %s14, 3
      %p141 = por %p139, %p140
      %p142 = scmp.ne.s32.totalorder %s134, %s137
      %p143 = scmp.eq.s32.totalorder %s14, 0
      %p144 = por %p142, %p143
      %p145 = scmp.ne.s32.totalorder %s134, %s137
      %p146 = scmp.eq.s32.totalorder %s19, 3
      %p147 = por %p145, %p146
      %p148 = scmp.ne.s32.totalorder %s137, %s138
      %p149 = scmp.eq.s32.totalorder %s19, 0
      %p150 = por %p148, %p149
      %p151 = scmp.ne.s32.totalorder %s137, %s138
      %p152 = scmp.eq.s32.totalorder %s20, 3
      %p153 = por %p151, %p152
      %p155 = scmp.ne.s32.totalorder %s138, %s154
      %p156 = scmp.eq.s32.totalorder %s20, 0
      %p157 = por %p155, %p156
      %p158 = scmp.le.s32.totalorder 1, %s14
      %p159 = scmp.lt.s32.totalorder %s14, 5
      %p160 = pnand %p158, %p159
      %p161 = pneg %p160
      // Predicated region
      $region9: #{tpu_custom_call.1} parent=5 // pred_check
        _
      $region10: #{tpu_custom_call.1} parent=5 // pred_check_branch
        %163 = sbr.rel (%p160) target = $region12
      $region11: #{tpu_custom_call.1} parent=5 // pred_region
        %s164 = ssub.s32 %s14, 1
        // Predicated region
        $region13: #{tpu_custom_call.1} parent=11 // pred_check
          %p165 = pneg %p61
        $region14: #{tpu_custom_call.1} parent=11 // pred_check_branch
          %167 = sbr.rel (%p165) target = $region16
        $region15: #{tpu_custom_call.1} parent=11 // pred_region
          _
        $region16: #{tpu_custom_call.1} parent=11 // pred_fallthru
          _
        // Predicated region
        $region17: #{tpu_custom_call.1} parent=11 // pred_check
          %p168 = pneg %p82
        $region18: #{tpu_custom_call.1} parent=11 // pred_check_branch
          %170 = sbr.rel (%p168) target = $region20
        $region19: #{tpu_custom_call.1} parent=11 // pred_region
          _
        $region20: #{tpu_custom_call.1} parent=11 // pred_fallthru
          _
        // Predicated region
        $region21: #{tpu_custom_call.1} parent=11 // pred_check
          %p171 = pneg %p103
        $region22: #{tpu_custom_call.1} parent=11 // pred_check_branch
          %173 = sbr.rel (%p171) target = $region24
        $region23: #{tpu_custom_call.1} parent=11 // pred_region
          _
        $region24: #{tpu_custom_call.1} parent=11 // pred_fallthru
          _
        // Predicated region
        $region25: #{tpu_custom_call.1} parent=11 // pred_check
          %p174 = pneg %p124
        $region26: #{tpu_custom_call.1} parent=11 // pred_check_branch
          %176 = sbr.rel (%p174) target = $region28
        $region27: #{tpu_custom_call.1} parent=11 // pred_region
          _
        $region28: #{tpu_custom_call.1} parent=11 // pred_fallthru
          _
      $region12: #{tpu_custom_call.1} parent=5 // pred_fallthru
        _
      %p177 = scmp.lt.s32.totalorder %s14, 4
      // Predicated region
      $region29: #{tpu_custom_call.1} parent=5 // pred_check
        %p178 = pneg %p177
      $region30: #{tpu_custom_call.1} parent=5 // pred_check_branch
        %180 = sbr.rel (%p178) target = $region32
      $region31: #{tpu_custom_call.1} parent=5 // pred_region
        // Predicated region
        $region33: #{tpu_custom_call.1} parent=31 // pred_check
          %p181 = pneg %p34
        $region34: #{tpu_custom_call.1} parent=31 // pred_check_branch
          %183 = sbr.rel (%p181) target = $region36
        $region35: #{tpu_custom_call.1} parent=31 // pred_region
          %s184 = smul.u32 8, %s14
          %p185 = scmp.lt.s32.totalorder %s184, 31
          %s186 = scalar_select %p185, %s184, 31
          %s187 = smul.addr %s186, 8
          %s188 = scalar_lea.vmem %s0, %s187
          %s189 = smul.u32 8, %s14
        $region36: #{tpu_custom_call.1} parent=31 // pred_fallthru
          _
      $region32: #{tpu_custom_call.1} parent=5 // pred_fallthru
        _
      %p190 = scmp.le.s32.totalorder 1, %s14
      %p191 = scmp.lt.s32.totalorder %s14, 5
      %p192 = pnand %p190, %p191
      %p193 = pneg %p192
      // Predicated region
      $region37: #{tpu_custom_call.1} parent=5 // pred_check
        _
      $region38: #{tpu_custom_call.1} parent=5 // pred_check_branch
        %195 = sbr.rel (%p192) target = $region40
      $region39: #{tpu_custom_call.1} parent=5 // pred_region
        %s196 = ssub.s32 %s14, 1
        %s197 = smul.u32 8, %s19
        %p198 = scmp.lt.s32.totalorder %s197, 31
        %s199 = scalar_select %p198, %s197, 31
        %s200 = smul.addr %s199, 8
        %s201 = scalar_lea.vmem %s0, %s200
        %p202 = pneg %p40
        %p203 = pneg %p37
        %p204 = pneg %p61
        %p205 = pneg %p58
        %p206 = pneg %p82
        %p207 = pneg %p79
        %p208 = pneg %p103
        %p209 = pneg %p100
        %p210 = pneg %p124
        %p211 = pneg %p121
        %p212 = pneg %p150
        %p213 = pneg %p147
        %s214 = sand.u32 %s137, 1
        %s215 = scalar_lea.sflag [#allocation3], %s214
        %s216 = sand.u32 %s137, 1
        %s217 = smul.addr %s216, 64
        %s218 = scalar_lea.vmem [#allocation2], %s217
        %s219 = smul.u32 8, %s19
        %p220 = scmp.lt.s32.totalorder %s219, 31
        %s221 = scalar_select %p220, %s219, 31
        %s222 = smul.addr %s221, 8
        %s223 = scalar_lea.vmem %s0, %s222
        %s224 = smul.u32 8, %s19
        %s225 = smul.u32 8, %s19
        %v226 = vld [vmem:[%s1] sm:$0xff]
        %v227 = vld [vmem:[%s1 + $0x8] sm:$0xff]
        %v228 = vld [vmem:[%s1 + $0x10] sm:$0xff]
        %v229 = vld [vmem:[%s1 + $0x18] sm:$0xff]
        %v230 = vld [vmem:[%s1 + $0x20] sm:$0xff]
        %v231 = vld [vmem:[%s1 + $0x28] sm:$0xff]
        %v232 = vld [vmem:[%s1 + $0x30] sm:$0xff]
        %v233 = vld [vmem:[%s1 + $0x38] sm:$0xff]
        %v234 = vld [vmem:[%s1 + $0x40] sm:$0xff]
        %v235 = vld [vmem:[%s1 + $0x48] sm:$0xff]
        %v236 = vld [vmem:[%s1 + $0x50] sm:$0xff]
        %v237 = vld [vmem:[%s1 + $0x58] sm:$0xff]
        %v238 = vld [vmem:[%s1 + $0x60] sm:$0xff]
        %v239 = vld [vmem:[%s1 + $0x68] sm:$0xff]
        %v240 = vld [vmem:[%s1 + $0x70] sm:$0xff]
        %v241 = vld [vmem:[%s1 + $0x78] sm:$0xff]
        %v242 = vld [vmem:[%s2] sm:$0xff]
        %v243 = vld [vmem:[%s2 + $0x8] sm:$0xff]
        %v244 = vld [vmem:[%s2 + $0x10] sm:$0xff]
        %v245 = vld [vmem:[%s2 + $0x18] sm:$0xff]
        %v246 = vld [vmem:[%s2 + $0x20] sm:$0xff]
        %v247 = vld [vmem:[%s2 + $0x28] sm:$0xff]
        %v248 = vld [vmem:[%s2 + $0x30] sm:$0xff]
        %v249 = vld [vmem:[%s2 + $0x38] sm:$0xff]
        %v250 = vld [vmem:[%s3] sm:$0xff]
        %v251 = vld [vmem:[%s3 + $0x8] sm:$0xff]
        %v252 = vld [vmem:[%s3 + $0x10] sm:$0xff]
        %v253 = vld [vmem:[%s3 + $0x18] sm:$0xff]
        %v254 = vld [vmem:[%s3 + $0x20] sm:$0xff]
        %v255 = vld [vmem:[%s3 + $0x28] sm:$0xff]
        %v256 = vld [vmem:[%s3 + $0x30] sm:$0xff]
        %v257 = vld [vmem:[%s3 + $0x38] sm:$0xff]
        %v258 = vld [vmem:[%s3 + $0x40] sm:$0xff]
        %v259 = vld [vmem:[%s3 + $0x48] sm:$0xff]
        %v260 = vld [vmem:[%s3 + $0x50] sm:$0xff]
        %v261 = vld [vmem:[%s3 + $0x58] sm:$0xff]
        %v262 = vld [vmem:[%s3 + $0x60] sm:$0xff]
        %v263 = vld [vmem:[%s3 + $0x68] sm:$0xff]
        %v264 = vld [vmem:[%s3 + $0x70] sm:$0xff]
        %v265 = vld [vmem:[%s3 + $0x78] sm:$0xff]
        %v266 = vld [vmem:[%s4] sm:$0xff]
        %v267 = vld [vmem:[%s4 + $0x8] sm:$0xff]
        %v268 = vld [vmem:[%s4 + $0x10] sm:$0xff]
        %v269 = vld [vmem:[%s4 + $0x18] sm:$0xff]
        %v270 = vld [vmem:[%s4 + $0x20] sm:$0xff]
        %v271 = vld [vmem:[%s4 + $0x28] sm:$0xff]
        %v272 = vld [vmem:[%s4 + $0x30] sm:$0xff]
        %v273 = vld [vmem:[%s4 + $0x38] sm:$0xff]
        %v274 = vld [vmem:[%s4 + $0x40] sm:$0xff]
        %v275 = vld [vmem:[%s4 + $0x48] sm:$0xff]
        %v276 = vld [vmem:[%s4 + $0x50] sm:$0xff]
        %v277 = vld [vmem:[%s4 + $0x58] sm:$0xff]
        %v278 = vld [vmem:[%s4 + $0x60] sm:$0xff]
        %v279 = vld [vmem:[%s4 + $0x68] sm:$0xff]
        %v280 = vld [vmem:[%s4 + $0x70] sm:$0xff]
        %v281 = vld [vmem:[%s4 + $0x78] sm:$0xff]
        %vm282 = vcmask 261120
        %v284 = vsel %vm282, %v226, 0
        %v287 = vsel %vm282, %v227, 0
        %v290 = vsel %vm282, %v228, 0
        %v293 = vsel %vm282, %v229, 0
        %v296 = vsel %vm282, %v230, 0
        %v299 = vsel %vm282, %v231, 0
        %v302 = vsel %vm282, %v232, 0
        %v305 = vsel %vm282, %v233, 0
        %v308 = vsel %vm282, %v234, 0
        %v311 = vsel %vm282, %v235, 0
        %v314 = vsel %vm282, %v236, 0
        %v317 = vsel %vm282, %v237, 0
        %v320 = vsel %vm282, %v238, 0
        %v323 = vsel %vm282, %v239, 0
        %v326 = vsel %vm282, %v240, 0
        %v329 = vsel %vm282, %v241, 0
        %v332 = vsel %vm282, %v242, 0
        %v335 = vsel %vm282, %v243, 0
        %v338 = vsel %vm282, %v244, 0
        %v341 = vsel %vm282, %v245, 0
        %v344 = vsel %vm282, %v246, 0
        %v347 = vsel %vm282, %v247, 0
        %v350 = vsel %vm282, %v248, 0
        %v353 = vsel %vm282, %v249, 0
        %355 = vmatprep.subr.mxu0 0.0
        %356 = vmatpush1.xpose.msra.mxu0 %v332
        %357 = vmatprep.subr.mxu0 0.0
        %358 = vmatpush1.xpose.msra.mxu0 %v335
        %359 = vmatprep.subr.mxu0 0.0
        %360 = vmatpush1.xpose.msra.mxu0 %v338
        %361 = vmatprep.subr.mxu0 0.0
        %362 = vmatpush1.xpose.msra.mxu0 %v341
        %363 = vmatprep.subr.mxu0 0.0
        %364 = vmatpush1.xpose.msra.mxu0 %v344
        %365 = vmatprep.subr.mxu0 0.0
        %366 = vmatpush1.xpose.msra.mxu0 %v347
        %367 = vmatprep.subr.mxu0 0.0
        %368 = vmatpush1.xpose.msra.mxu0 %v350
        %369 = vmatprep.subr.mxu0 0.0
        %370 = vmatpush1.xpose.msra.mxu0 %v353
        %371 = vmatprep.subr.mxu0 0.0
        %372 = vmatpush1.xpose.msra.mxu0 0.0
        %373 = vmatprep.subr.mxu0 0.0
        %374 = vmatpush1.xpose.msra.mxu0 0.0
        %375 = vmatprep.subr.mxu0 0.0
        %376 = vmatpush1.xpose.msra.mxu0 0.0
        %377 = vmatprep.subr.mxu0 0.0
        %378 = vmatpush1.xpose.msra.mxu0 0.0
        %379 = vmatprep.subr.mxu0 0.0
        %380 = vmatpush1.xpose.msra.mxu0 0.0
        %381 = vmatprep.subr.mxu0 0.0
        %382 = vmatpush1.xpose.msra.mxu0 0.0
        %383 = vmatprep.subr.mxu0 0.0
        %384 = vmatpush1.xpose.msra.mxu0 0.0
        %385 = vmatprep.subr.mxu0 0.0
        %386 = vmatpush1.xpose.msra.mxu0 0.0
        %387 = vmatprep.subr.mxu0 0.0
        %388 = vmatpush1.xpose.msra.mxu0 0.0
        %389 = vmatprep.subr.mxu0 0.0
        %390 = vmatpush1.xpose.msra.mxu0 0.0
        %391 = vmatprep.subr.mxu0 0.0
        %392 = vmatpush1.xpose.msra.mxu0 0.0
        %393 = vmatprep.subr.mxu0 0.0
        %394 = vmatpush1.xpose.msra.mxu0 0.0
        %395 = vmatprep.subr.mxu0 0.0
        %396 = vmatpush1.xpose.msra.mxu0 0.0
        %397 = vmatprep.subr.mxu0 0.0
        %398 = vmatpush1.xpose.msra.mxu0 0.0
        %399 = vmatprep.subr.mxu0 0.0
        %400 = vmatpush1.xpose.msra.mxu0 0.0
        %401 = vmatprep.subr.mxu0 0.0
        %402 = vmatpush1.xpose.msra.mxu0 0.0
        %403 = vmatprep.subr.mxu0 0.0
        %404 = vmatpush1.xpose.msra.mxu0 0.0
        %405 = vmatprep.subr.mxu0 0.0
        %406 = vmatpush1.xpose.msra.mxu0 0.0
        %407 = vmatprep.subr.mxu0 0.0
        %408 = vmatpush1.xpose.msra.mxu0 0.0
        %409 = vmatprep.subr.mxu0 0.0
        %410 = vmatpush1.xpose.msra.mxu0 0.0
        %411 = vmatprep.subr.mxu0 0.0
        %412 = vmatpush1.xpose.msra.mxu0 0.0
        %413 = vmatprep.subr.mxu0 0.0
        %414 = vmatpush1.xpose.msra.mxu0 0.0
        %415 = vmatprep.subr.mxu0 0.0
        %416 = vmatpush1.xpose.msra.mxu0 0.0
        %417 = vmatprep.subr.mxu0 0.0
        %418 = vmatpush1.xpose.msra.mxu0 0.0
        %419 = vmatprep.mubr.f32.mxu0 0.0
        %420 = vmatmul.mubr.f32.gmra.mrb[0].mxu0 %v284
        %v421 = vpop.f32.mrb[0].mxu0
        %v422 = vadd.f32 0.0, %v421
        %v423 = vpop.f32.mrb[0].mxu0
        %424 = vmatprep.mubr.f32.mxu0 0.0
        %425 = vmatmul.mubr.f32.gmra.mrb[0].mxu0 %v287
        %v426 = vpop.f32.mrb[0].mxu0
        %v427 = vadd.f32 0.0, %v426
        %v428 = vpop.f32.mrb[0].mxu0
        %429 = vmatprep.mubr.f32.mxu0 0.0
        %430 = vmatmul.mubr.f32.gmra.mrb[0].mxu0 %v290
        %v431 = vpop.f32.mrb[0].mxu0
        %v432 = vadd.f32 0.0, %v431
        %v433 = vpop.f32.mrb[0].mxu0
        %434 = vmatprep.mubr.f32.mxu0 0.0
        %435 = vmatmul.mubr.f32.gmra.mrb[0].mxu0 %v293
        %v436 = vpop.f32.mrb[0].mxu0
        %v437 = vadd.f32 0.0, %v436
        %v438 = vpop.f32.mrb[0].mxu0
        %439 = vmatprep.mubr.f32.mxu0 0.0
        %440 = vmatmul.mubr.f32.gmra.mrb[0].mxu0 %v296
        %v441 = vpop.f32.mrb[0].mxu0
        %v442 = vadd.f32 0.0, %v441
        %v443 = vpop.f32.mrb[0].mxu0
        %444 = vmatprep.mubr.f32.mxu0 0.0
        %445 = vmatmul.mubr.f32.gmra.mrb[0].mxu0 %v299
        %v446 = vpop.f32.mrb[0].mxu0
        %v447 = vadd.f32 0.0, %v446
        %v448 = vpop.f32.mrb[0].mxu0
        %449 = vmatprep.mubr.f32.mxu0 0.0
        %450 = vmatmul.mubr.f32.gmra.mrb[0].mxu0 %v302
        %v451 = vpop.f32.mrb[0].mxu0
        %v452 = vadd.f32 0.0, %v451
        %v453 = vpop.f32.mrb[0].mxu0
        %454 = vmatprep.mubr.f32.mxu0 0.0
        %455 = vmatmul.mubr.f32.gmra.mrb[0].mxu0 %v305
        %v456 = vpop.f32.mrb[0].mxu0
        %v457 = vadd.f32 0.0, %v456
        %v458 = vpop.f32.mrb[0].mxu0
        %459 = vmatprep.mubr.f32.mxu0 0.0
        %460 = vmatmul.mubr.f32.gmra.mrb[0].mxu0 %v308
        %v461 = vpop.f32.mrb[0].mxu0
        %v462 = vadd.f32 0.0, %v461
        %v463 = vpop.f32.mrb[0].mxu0
        %464 = vmatprep.mubr.f32.mxu0 0.0
        %465 = vmatmul.mubr.f32.gmra.mrb[0].mxu0 %v311
        %v466 = vpop.f32.mrb[0].mxu0
        %v467 = vadd.f32 0.0, %v466
        %v468 = vpop.f32.mrb[0].mxu0
        %469 = vmatprep.mubr.f32.mxu0 0.0
        %470 = vmatmul.mubr.f32.gmra.mrb[0].mxu0 %v314
        %v471 = vpop.f32.mrb[0].mxu0
        %v472 = vadd.f32 0.0, %v471
        %v473 = vpop.f32.mrb[0].mxu0
        %474 = vmatprep.mubr.f32.mxu0 0.0
        %475 = vmatmul.mubr.f32.gmra.mrb[0].mxu0 %v317
        %v476 = vpop.f32.mrb[0].mxu0
        %v477 = vadd.f32 0.0, %v476
        %v478 = vpop.f32.mrb[0].mxu0
        %479 = vmatprep.mubr.f32.mxu0 0.0
        %480 = vmatmul.mubr.f32.gmra.mrb[0].mxu0 %v320
        %v481 = vpop.f32.mrb[0].mxu0
        %v482 = vadd.f32 0.0, %v481
        %v483 = vpop.f32.mrb[0].mxu0
        %484 = vmatprep.mubr.f32.mxu0 0.0
        %485 = vmatmul.mubr.f32.gmra.mrb[0].mxu0 %v323
        %v486 = vpop.f32.mrb[0].mxu0
        %v487 = vadd.f32 0.0, %v486
        %v488 = vpop.f32.mrb[0].mxu0
        %489 = vmatprep.mubr.f32.mxu0 0.0
        %490 = vmatmul.mubr.f32.gmra.mrb[0].mxu0 %v326
        %v491 = vpop.f32.mrb[0].mxu0
        %v492 = vadd.f32 0.0, %v491
        %v493 = vpop.f32.mrb[0].mxu0
        %494 = vmatprep.mubr.f32.mxu0 0.0
        %495 = vmatmul.mubr.f32.gmra.mrb[0].mxu0 %v329
        %v496 = vpop.f32.mrb[0].mxu0
        %v497 = vadd.f32 0.0, %v496
        %v498 = vpop.f32.mrb[0].mxu0
        %499 = vdwg.mxu0
        %v500 = vmul.f32 %v422, 0.015625
        %v501 = vmul.f32 %v427, 0.015625
        %v502 = vmul.f32 %v432, 0.015625
        %v503 = vmul.f32 %v437, 0.015625
        %v504 = vmul.f32 %v442, 0.015625
        %v505 = vmul.f32 %v447, 0.015625
        %v506 = vmul.f32 %v452, 0.015625
        %v507 = vmul.f32 %v457, 0.015625
        %v508 = vmul.f32 %v462, 0.015625
        %v509 = vmul.f32 %v467, 0.015625
        %v510 = vmul.f32 %v472, 0.015625
        %v511 = vmul.f32 %v477, 0.015625
        %v512 = vmul.f32 %v482, 0.015625
        %v513 = vmul.f32 %v487, 0.015625
        %v514 = vmul.f32 %v492, 0.015625
        %v515 = vmul.f32 %v497, 0.015625
        %vm516 = vcmask 523264
        %v517 = vsel %vm516, %v500, -inf
        %518 = vmax.xlane.f32.xlu0 %v517
        %v519 = vpop.xlane.xlu0 %518
        %v520 = vsel %vm516, %v501, -inf
        %521 = vmax.xlane.f32.xlu0 %v520
        %v522 = vpop.xlane.xlu0 %521
        %v523 = vsel %vm516, %v502, -inf
        %524 = vmax.xlane.f32.xlu0 %v523
        %v525 = vpop.xlane.xlu0 %524
        %v526 = vsel %vm516, %v503, -inf
        %527 = vmax.xlane.f32.xlu0 %v526
        %v528 = vpop.xlane.xlu0 %527
        %v529 = vsel %vm516, %v504, -inf
        %530 = vmax.xlane.f32.xlu0 %v529
        %v531 = vpop.xlane.xlu0 %530
        %v532 = vsel %vm516, %v505, -inf
        %533 = vmax.xlane.f32.xlu0 %v532
        %v534 = vpop.xlane.xlu0 %533
        %v535 = vsel %vm516, %v506, -inf
        %536 = vmax.xlane.f32.xlu0 %v535
        %v537 = vpop.xlane.xlu0 %536
        %v538 = vsel %vm516, %v507, -inf
        %539 = vmax.xlane.f32.xlu0 %v538
        %v540 = vpop.xlane.xlu0 %539
        %v541 = vsel %vm516, %v508, -inf
        %542 = vmax.xlane.f32.xlu0 %v541
        %v543 = vpop.xlane.xlu0 %542
        %v544 = vsel %vm516, %v509, -inf
        %545 = vmax.xlane.f32.xlu0 %v544
        %v546 = vpop.xlane.xlu0 %545
        %v547 = vsel %vm516, %v510, -inf
        %548 = vmax.xlane.f32.xlu0 %v547
        %v549 = vpop.xlane.xlu0 %548
        %v550 = vsel %vm516, %v511, -inf
        %551 = vmax.xlane.f32.xlu0 %v550
        %v552 = vpop.xlane.xlu0 %551
        %v553 = vsel %vm516, %v512, -inf
        %554 = vmax.xlane.f32.xlu0 %v553
        %v555 = vpop.xlane.xlu0 %554
        %v556 = vsel %vm516, %v513, -inf
        %557 = vmax.xlane.f32.xlu0 %v556
        %v558 = vpop.xlane.xlu0 %557
        %v559 = vsel %vm516, %v514, -inf
        %560 = vmax.xlane.f32.xlu0 %v559
        %v561 = vpop.xlane.xlu0 %560
        %v562 = vsel %vm516, %v515, -inf
        %563 = vmax.xlane.f32.xlu0 %v562
        %v564 = vpop.xlane.xlu0 %563
        %v565 = vsub.f32 %v500, %v519
        %v566 = vsub.f32 %v501, %v522
        %v567 = vsub.f32 %v502, %v525
        %v568 = vsub.f32 %v503, %v528
        %v569 = vsub.f32 %v504, %v531
        %v570 = vsub.f32 %v505, %v534
        %v571 = vsub.f32 %v506, %v537
        %v572 = vsub.f32 %v507, %v540
        %v573 = vsub.f32 %v508, %v543
        %v574 = vsub.f32 %v509, %v546
        %v575 = vsub.f32 %v510, %v549
        %v576 = vsub.f32 %v511, %v552
        %v577 = vsub.f32 %v512, %v555
        %v578 = vsub.f32 %v513, %v558
        %v579 = vsub.f32 %v514, %v561
        %v580 = vsub.f32 %v515, %v564
        %v581 = vmul.f32 %v565, 1.442695
        %v582 = vpow.pop %v581
        %v583 = vmul.f32 %v566, 1.442695
        %v584 = vpow.pop %v583
        %v585 = vmul.f32 %v567, 1.442695
        %v586 = vpow.pop %v585
        %v587 = vmul.f32 %v568, 1.442695
        %v588 = vpow.pop %v587
        %v589 = vmul.f32 %v569, 1.442695
        %v590 = vpow.pop %v589
        %v591 = vmul.f32 %v570, 1.442695
        %v592 = vpow.pop %v591
        %v593 = vmul.f32 %v571, 1.442695
        %v594 = vpow.pop %v593
        %v595 = vmul.f32 %v572, 1.442695
        %v596 = vpow.pop %v595
        %v597 = vmul.f32 %v573, 1.442695
        %v598 = vpow.pop %v597
        %v599 = vmul.f32 %v574, 1.442695
        %v600 = vpow.pop %v599
        %v601 = vmul.f32 %v575, 1.442695
        %v602 = vpow.pop %v601
        %v603 = vmul.f32 %v576, 1.442695
        %v604 = vpow.pop %v603
        %v605 = vmul.f32 %v577, 1.442695
        %v606 = vpow.pop %v605
        %v607 = vmul.f32 %v578, 1.442695
        %v608 = vpow.pop %v607
        %v609 = vmul.f32 %v579, 1.442695
        %v610 = vpow.pop %v609
        %v611 = vmul.f32 %v580, 1.442695
        %v612 = vpow.pop %v611
        %v613 = vsel %vm516, %v582, 0.0
        %614 = vadd.xlane.f32.xlu0 %v613
        %v615 = vpop.xlane.xlu0 %614
        %v616 = vsel %vm516, %v584, 0.0
        %617 = vadd.xlane.f32.xlu0 %v616
        %v618 = vpop.xlane.xlu0 %617
        %v619 = vsel %vm516, %v586, 0.0
        %620 = vadd.xlane.f32.xlu0 %v619
        %v621 = vpop.xlane.xlu0 %620
        %v622 = vsel %vm516, %v588, 0.0
        %623 = vadd.xlane.f32.xlu0 %v622
        %v624 = vpop.xlane.xlu0 %623
        %v625 = vsel %vm516, %v590, 0.0
        %626 = vadd.xlane.f32.xlu0 %v625
        %v627 = vpop.xlane.xlu0 %626
        %v628 = vsel %vm516, %v592, 0.0
        %629 = vadd.xlane.f32.xlu0 %v628
        %v630 = vpop.xlane.xlu0 %629
        %v631 = vsel %vm516, %v594, 0.0
        %632 = vadd.xlane.f32.xlu0 %v631
        %v633 = vpop.xlane.xlu0 %632
        %v634 = vsel %vm516, %v596, 0.0
        %635 = vadd.xlane.f32.xlu0 %v634
        %v636 = vpop.xlane.xlu0 %635
        %v637 = vsel %vm516, %v598, 0.0
        %638 = vadd.xlane.f32.xlu0 %v637
        %v639 = vpop.xlane.xlu0 %638
        %v640 = vsel %vm516, %v600, 0.0
        %641 = vadd.xlane.f32.xlu0 %v640
        %v642 = vpop.xlane.xlu0 %641
        %v643 = vsel %vm516, %v602, 0.0
        %644 = vadd.xlane.f32.xlu0 %v643
        %v645 = vpop.xlane.xlu0 %644
        %v646 = vsel %vm516, %v604, 0.0
        %647 = vadd.xlane.f32.xlu0 %v646
        %v648 = vpop.xlane.xlu0 %647
        %v649 = vsel %vm516, %v606, 0.0
        %650 = vadd.xlane.f32.xlu0 %v649
        %v651 = vpop.xlane.xlu0 %650
        %v652 = vsel %vm516, %v608, 0.0
        %653 = vadd.xlane.f32.xlu0 %v652
        %v654 = vpop.xlane.xlu0 %653
        %v655 = vsel %vm516, %v610, 0.0
        %656 = vadd.xlane.f32.xlu0 %v655
        %v657 = vpop.xlane.xlu0 %656
        %v658 = vsel %vm516, %v612, 0.0
        %659 = vadd.xlane.f32.xlu0 %v658
        %v660 = vpop.xlane.xlu0 %659
        %v661 = vrcp.pop %v615
        %v662 = vmul.f32 %v582, %v661
        %v663 = vrcp.pop %v618
        %v664 = vmul.f32 %v584, %v663
        %v665 = vrcp.pop %v621
        %v666 = vmul.f32 %v586, %v665
        %v667 = vrcp.pop %v624
        %v668 = vmul.f32 %v588, %v667
        %v669 = vrcp.pop %v627
        %v670 = vmul.f32 %v590, %v669
        %v671 = vrcp.pop %v630
        %v672 = vmul.f32 %v592, %v671
        %v673 = vrcp.pop %v633
        %v674 = vmul.f32 %v594, %v673
        %v675 = vrcp.pop %v636
        %v676 = vmul.f32 %v596, %v675
        %v677 = vrcp.pop %v639
        %v678 = vmul.f32 %v598, %v677
        %v679 = vrcp.pop %v642
        %v680 = vmul.f32 %v600, %v679
        %v681 = vrcp.pop %v645
        %v682 = vmul.f32 %v602, %v681
        %v683 = vrcp.pop %v648
        %v684 = vmul.f32 %v604, %v683
        %v685 = vrcp.pop %v651
        %v686 = vmul.f32 %v606, %v685
        %v687 = vrcp.pop %v654
        %v688 = vmul.f32 %v608, %v687
        %v689 = vrcp.pop %v657
        %v690 = vmul.f32 %v610, %v689
        %v691 = vrcp.pop %v660
        %v692 = vmul.f32 %v612, %v691
        %693 = vxpose.xlu0.b32.start [1/16] %v266, 128
        %694 = vxpose.xlu0.b32.cont [2/16] %v267, 128
        %695 = vxpose.xlu0.b32.cont [3/16] %v268, 128
        %696 = vxpose.xlu0.b32.cont [4/16] %v269, 128
        %697 = vxpose.xlu0.b32.cont [5/16] %v270, 128
        %698 = vxpose.xlu0.b32.cont [6/16] %v271, 128
        %699 = vxpose.xlu0.b32.cont [7/16] %v272, 128
        %700 = vxpose.xlu0.b32.cont [8/16] %v273, 128
        %701 = vxpose.xlu0.b32.cont [9/16] %v274, 128
        %702 = vxpose.xlu0.b32.cont [10/16] %v275, 128
        %703 = vxpose.xlu0.b32.cont [11/16] %v276, 128
        %704 = vxpose.xlu0.b32.cont [12/16] %v277, 128
        %705 = vxpose.xlu0.b32.cont [13/16] %v278, 128
        %706 = vxpose.xlu0.b32.cont [14/16] %v279, 128
        %707 = vxpose.xlu0.b32.cont [15/16] %v280, 128
        %708 = vxpose.xlu0.b32.end [16/16] %v281, 128
        %v709 = vpop.trf.xlu0
        %v710 = vpop.trf.xlu0
        %v711 = vpop.trf.xlu0
        %v712 = vpop.trf.xlu0
        %v713 = vpop.trf.xlu0
        %v714 = vpop.trf.xlu0
        %v715 = vpop.trf.xlu0
        %v716 = vpop.trf.xlu0
        %v717 = vpop.trf.xlu0
        %v718 = vpop.trf.xlu0
        %v719 = vpop.trf.xlu0
        %v720 = vpop.trf.xlu0
        %v721 = vpop.trf.xlu0
        %v722 = vpop.trf.xlu0
        %v723 = vpop.trf.xlu0
        %v724 = vpop.trf.xlu0
        %725 = vmatprep.subr.mxu0 0.0
        %726 = vmatpush1.msra.mxu0 %v250
        %727 = vmatprep.subr.mxu0 0.0
        %728 = vmatpush1.msra.mxu0 %v251
        %729 = vmatprep.subr.mxu0 0.0
        %730 = vmatpush1.msra.mxu0 %v252
        %731 = vmatprep.subr.mxu0 0.0
        %732 = vmatpush1.msra.mxu0 %v253
        %733 = vmatprep.subr.mxu0 0.0
        %734 = vmatpush1.msra.mxu0 %v254
        %735 = vmatprep.subr.mxu0 0.0
        %736 = vmatpush1.msra.mxu0 %v255
        %737 = vmatprep.subr.mxu0 0.0
        %738 = vmatpush1.msra.mxu0 %v256
        %739 = vmatprep.subr.mxu0 0.0
        %740 = vmatpush1.msra.mxu0 %v257
        %741 = vmatprep.subr.mxu0 0.0
        %742 = vmatpush1.msra.mxu0 %v258
        %743 = vmatprep.subr.mxu0 0.0
        %744 = vmatpush1.msra.mxu0 %v259
        %745 = vmatprep.subr.mxu0 0.0
        %746 = vmatpush1.msra.mxu0 %v260
        %747 = vmatprep.subr.mxu0 0.0
        %748 = vmatpush1.msra.mxu0 %v261
        %749 = vmatprep.subr.mxu0 0.0
        %750 = vmatpush1.msra.mxu0 %v262
        %751 = vmatprep.subr.mxu0 0.0
        %752 = vmatpush1.msra.mxu0 %v263
        %753 = vmatprep.subr.mxu0 0.0
        %754 = vmatpush1.msra.mxu0 %v264
        %755 = vmatprep.subr.mxu0 0.0
        %756 = vmatpush1.msra.mxu0 %v265
        %757 = vmatprep.subr.mxu0 0.0
        %758 = vmatpush1.msra.mxu0 0.0
        %759 = vmatprep.subr.mxu0 0.0
        %760 = vmatpush1.msra.mxu0 0.0
        %761 = vmatprep.subr.mxu0 0.0
        %762 = vmatpush1.msra.mxu0 0.0
        %763 = vmatprep.subr.mxu0 0.0
        %764 = vmatpush1.msra.mxu0 0.0
        %765 = vmatprep.subr.mxu0 0.0
        %766 = vmatpush1.msra.mxu0 0.0
        %767 = vmatprep.subr.mxu0 0.0
        %768 = vmatpush1.msra.mxu0 0.0
        %769 = vmatprep.subr.mxu0 0.0
        %770 = vmatpush1.msra.mxu0 0.0
        %771 = vmatprep.subr.mxu0 0.0
        %772 = vmatpush1.msra.mxu0 0.0
        %773 = vmatprep.subr.mxu0 0.0
        %774 = vmatpush1.msra.mxu0 0.0
        %775 = vmatprep.subr.mxu0 0.0
        %776 = vmatpush1.msra.mxu0 0.0
        %777 = vmatprep.subr.mxu0 0.0
        %778 = vmatpush1.msra.mxu0 0.0
        %779 = vmatprep.subr.mxu0 0.0
        %780 = vmatpush1.msra.mxu0 0.0
        %781 = vmatprep.subr.mxu0 0.0
        %782 = vmatpush1.msra.mxu0 0.0
        %783 = vmatprep.subr.mxu0 0.0
        %784 = vmatpush1.msra.mxu0 0.0
        %785 = vmatprep.subr.mxu0 0.0
        %786 = vmatpush1.msra.mxu0 0.0
        %787 = vmatprep.subr.mxu0 0.0
        %788 = vmatpush1.msra.mxu0 0.0
        %789 = vmatprep.mubr.f32.mxu0 0.0
        %790 = vmatmul.mubr.f32.gmra.mrb[0].mxu0 %v709
        %v791 = vpop.f32.mrb[0].mxu0
        %v792 = vadd.f32 0.0, %v791
        %v793 = vpop.f32.mrb[0].mxu0
        %794 = vmatprep.mubr.f32.mxu0 0.0
        %795 = vmatmul.mubr.f32.gmra.mrb[0].mxu0 %v710
        %v796 = vpop.f32.mrb[0].mxu0
        %v797 = vadd.f32 0.0, %v796
        %v798 = vpop.f32.mrb[0].mxu0
        %799 = vmatprep.mubr.f32.mxu0 0.0
        %800 = vmatmul.mubr.f32.gmra.mrb[0].mxu0 %v711
        %v801 = vpop.f32.mrb[0].mxu0
        %v802 = vadd.f32 0.0, %v801
        %v803 = vpop.f32.mrb[0].mxu0
        %804 = vmatprep.mubr.f32.mxu0 0.0
        %805 = vmatmul.mubr.f32.gmra.mrb[0].mxu0 %v712
        %v806 = vpop.f32.mrb[0].mxu0
        %v807 = vadd.f32 0.0, %v806
        %v808 = vpop.f32.mrb[0].mxu0
        %809 = vmatprep.mubr.f32.mxu0 0.0
        %810 = vmatmul.mubr.f32.gmra.mrb[0].mxu0 %v713
        %v811 = vpop.f32.mrb[0].mxu0
        %v812 = vadd.f32 0.0, %v811
        %v813 = vpop.f32.mrb[0].mxu0
        %814 = vmatprep.mubr.f32.mxu0 0.0
        %815 = vmatmul.mubr.f32.gmra.mrb[0].mxu0 %v714
        %v816 = vpop.f32.mrb[0].mxu0
        %v817 = vadd.f32 0.0, %v816
        %v818 = vpop.f32.mrb[0].mxu0
        %819 = vmatprep.mubr.f32.mxu0 0.0
        %820 = vmatmul.mubr.f32.gmra.mrb[0].mxu0 %v715
        %v821 = vpop.f32.mrb[0].mxu0
        %v822 = vadd.f32 0.0, %v821
        %v823 = vpop.f32.mrb[0].mxu0
        %824 = vmatprep.mubr.f32.mxu0 0.0
        %825 = vmatmul.mubr.f32.gmra.mrb[0].mxu0 %v716
        %v826 = vpop.f32.mrb[0].mxu0
        %v827 = vadd.f32 0.0, %v826
        %v828 = vpop.f32.mrb[0].mxu0
        %829 = vmatprep.mubr.f32.mxu0 0.0
        %830 = vmatmul.mubr.f32.gmra.mrb[0].mxu0 %v717
        %v831 = vpop.f32.mrb[0].mxu0
        %v832 = vadd.f32 0.0, %v831
        %v833 = vpop.f32.mrb[0].mxu0
        %834 = vmatprep.mubr.f32.mxu0 0.0
        %835 = vmatmul.mubr.f32.gmra.mrb[0].mxu0 %v718
        %v836 = vpop.f32.mrb[0].mxu0
        %v837 = vadd.f32 0.0, %v836
        %v838 = vpop.f32.mrb[0].mxu0
        %839 = vmatprep.mubr.f32.mxu0 0.0
        %840 = vmatmul.mubr.f32.gmra.mrb[0].mxu0 %v719
        %v841 = vpop.f32.mrb[0].mxu0
        %v842 = vadd.f32 0.0, %v841
        %v843 = vpop.f32.mrb[0].mxu0
        %844 = vmatprep.mubr.f32.mxu0 0.0
        %845 = vmatmul.mubr.f32.gmra.mrb[0].mxu0 %v720
        %v846 = vpop.f32.mrb[0].mxu0
        %v847 = vadd.f32 0.0, %v846
        %v848 = vpop.f32.mrb[0].mxu0
        %849 = vmatprep.mubr.f32.mxu0 0.0
        %850 = vmatmul.mubr.f32.gmra.mrb[0].mxu0 %v721
        %v851 = vpop.f32.mrb[0].mxu0
        %v852 = vadd.f32 0.0, %v851
        %v853 = vpop.f32.mrb[0].mxu0
        %854 = vmatprep.mubr.f32.mxu0 0.0
        %855 = vmatmul.mubr.f32.gmra.mrb[0].mxu0 %v722
        %v856 = vpop.f32.mrb[0].mxu0
        %v857 = vadd.f32 0.0, %v856
        %v858 = vpop.f32.mrb[0].mxu0
        %859 = vmatprep.mubr.f32.mxu0 0.0
        %860 = vmatmul.mubr.f32.gmra.mrb[0].mxu0 %v723
        %v861 = vpop.f32.mrb[0].mxu0
        %v862 = vadd.f32 0.0, %v861
        %v863 = vpop.f32.mrb[0].mxu0
        %864 = vmatprep.mubr.f32.mxu0 0.0
        %865 = vmatmul.mubr.f32.gmra.mrb[0].mxu0 %v724
        %v866 = vpop.f32.mrb[0].mxu0
        %v867 = vadd.f32 0.0, %v866
        %v868 = vpop.f32.mrb[0].mxu0
        %869 = vdwg.mxu0
        %v871 = vsel %vm516, %v792, 0
        %v874 = vsel %vm516, %v797, 0
        %v877 = vsel %vm516, %v802, 0
        %v880 = vsel %vm516, %v807, 0
        %v883 = vsel %vm516, %v812, 0
        %v886 = vsel %vm516, %v817, 0
        %v889 = vsel %vm516, %v822, 0
        %v892 = vsel %vm516, %v827, 0
        %v895 = vsel %vm516, %v832, 0
        %v898 = vsel %vm516, %v837, 0
        %v901 = vsel %vm516, %v842, 0
        %v904 = vsel %vm516, %v847, 0
        %v907 = vsel %vm516, %v852, 0
        %v910 = vsel %vm516, %v857, 0
        %v913 = vsel %vm516, %v862, 0
        %v916 = vsel %vm516, %v867, 0
        %v919 = vsel %vm516, %v662, 0
        %v922 = vsel %vm516, %v664, 0
        %v925 = vsel %vm516, %v666, 0
        %v928 = vsel %vm516, %v668, 0
        %v931 = vsel %vm516, %v670, 0
        %v934 = vsel %vm516, %v672, 0
        %v937 = vsel %vm516, %v674, 0
        %v940 = vsel %vm516, %v676, 0
        %v943 = vsel %vm516, %v678, 0
        %v946 = vsel %vm516, %v680, 0
        %v949 = vsel %vm516, %v682, 0
        %v952 = vsel %vm516, %v684, 0
        %v955 = vsel %vm516, %v686, 0
        %v958 = vsel %vm516, %v688, 0
        %v961 = vsel %vm516, %v690, 0
        %v964 = vsel %vm516, %v692, 0
        %966 = vmatprep.subr.mxu0 0.0
        %967 = vmatpush1.xpose.msra.mxu0 %v919
        %968 = vmatprep.subr.mxu0 0.0
        %969 = vmatpush1.xpose.msra.mxu0 %v922
        %970 = vmatprep.subr.mxu0 0.0
        %971 = vmatpush1.xpose.msra.mxu0 %v925
        %972 = vmatprep.subr.mxu0 0.0
        %973 = vmatpush1.xpose.msra.mxu0 %v928
        %974 = vmatprep.subr.mxu0 0.0
        %975 = vmatpush1.xpose.msra.mxu0 %v931
        %976 = vmatprep.subr.mxu0 0.0
        %977 = vmatpush1.xpose.msra.mxu0 %v934
        %978 = vmatprep.subr.mxu0 0.0
        %979 = vmatpush1.xpose.msra.mxu0 %v937
        %980 = vmatprep.subr.mxu0 0.0
        %981 = vmatpush1.xpose.msra.mxu0 %v940
        %982 = vmatprep.subr.mxu0 0.0
        %983 = vmatpush1.xpose.msra.mxu0 %v943
        %984 = vmatprep.subr.mxu0 0.0
        %985 = vmatpush1.xpose.msra.mxu0 %v946
        %986 = vmatprep.subr.mxu0 0.0
        %987 = vmatpush1.xpose.msra.mxu0 %v949
        %988 = vmatprep.subr.mxu0 0.0
        %989 = vmatpush1.xpose.msra.mxu0 %v952
        %990 = vmatprep.subr.mxu0 0.0
        %991 = vmatpush1.xpose.msra.mxu0 %v955
        %992 = vmatprep.subr.mxu0 0.0
        %993 = vmatpush1.xpose.msra.mxu0 %v958
        %994 = vmatprep.subr.mxu0 0.0
        %995 = vmatpush1.xpose.msra.mxu0 %v961
        %996 = vmatprep.subr.mxu0 0.0
        %997 = vmatpush1.xpose.msra.mxu0 %v964
        %998 = vmatprep.subr.mxu0 0.0
        %999 = vmatpush1.xpose.msra.mxu0 0.0
        %1000 = vmatprep.subr.mxu0 0.0
        %1001 = vmatpush1.xpose.msra.mxu0 0.0
        %1002 = vmatprep.subr.mxu0 0.0
        %1003 = vmatpush1.xpose.msra.mxu0 0.0
        %1004 = vmatprep.subr.mxu0 0.0
        %1005 = vmatpush1.xpose.msra.mxu0 0.0
        %1006 = vmatprep.subr.mxu0 0.0
        %1007 = vmatpush1.xpose.msra.mxu0 0.0
        %1008 = vmatprep.subr.mxu0 0.0
        %1009 = vmatpush1.xpose.msra.mxu0 0.0
        %1010 = vmatprep.subr.mxu0 0.0
        %1011 = vmatpush1.xpose.msra.mxu0 0.0
        %1012 = vmatprep.subr.mxu0 0.0
        %1013 = vmatpush1.xpose.msra.mxu0 0.0
        %1014 = vmatprep.subr.mxu0 0.0
        %1015 = vmatpush1.xpose.msra.mxu0 0.0
        %1016 = vmatprep.subr.mxu0 0.0
        %1017 = vmatpush1.xpose.msra.mxu0 0.0
        %1018 = vmatprep.subr.mxu0 0.0
        %1019 = vmatpush1.xpose.msra.mxu0 0.0
        %1020 = vmatprep.subr.mxu0 0.0
        %1021 = vmatpush1.xpose.msra.mxu0 0.0
        %1022 = vmatprep.subr.mxu0 0.0
        %1023 = vmatpush1.xpose.msra.mxu0 0.0
        %1024 = vmatprep.subr.mxu0 0.0
        %1025 = vmatpush1.xpose.msra.mxu0 0.0
        %1026 = vmatprep.subr.mxu0 0.0
        %1027 = vmatpush1.xpose.msra.mxu0 0.0
        %1028 = vmatprep.subr.mxu0 0.0
        %1029 = vmatpush1.xpose.msra.mxu0 0.0
        %1030 = vmatprep.mubr.f32.mxu0 0.0
        %1031 = vmatmul.mubr.f32.gmra.mrb[0].mxu0 %v871
        %v1032 = vpop.f32.mrb[0].mxu0
        %v1033 = vadd.f32 0.0, %v1032
        %v1034 = vpop.f32.mrb[0].mxu0
        %1035 = vmatprep.mubr.f32.mxu0 0.0
        %1036 = vmatmul.mubr.f32.gmra.mrb[0].mxu0 %v874
        %v1037 = vpop.f32.mrb[0].mxu0
        %v1038 = vadd.f32 0.0, %v1037
        %v1039 = vpop.f32.mrb[0].mxu0
        %1040 = vmatprep.mubr.f32.mxu0 0.0
        %1041 = vmatmul.mubr.f32.gmra.mrb[0].mxu0 %v877
        %v1042 = vpop.f32.mrb[0].mxu0
        %v1043 = vadd.f32 0.0, %v1042
        %v1044 = vpop.f32.mrb[0].mxu0
        %1045 = vmatprep.mubr.f32.mxu0 0.0
        %1046 = vmatmul.mubr.f32.gmra.mrb[0].mxu0 %v880
        %v1047 = vpop.f32.mrb[0].mxu0
        %v1048 = vadd.f32 0.0, %v1047
        %v1049 = vpop.f32.mrb[0].mxu0
        %1050 = vmatprep.mubr.f32.mxu0 0.0
        %1051 = vmatmul.mubr.f32.gmra.mrb[0].mxu0 %v883
        %v1052 = vpop.f32.mrb[0].mxu0
        %v1053 = vadd.f32 0.0, %v1052
        %v1054 = vpop.f32.mrb[0].mxu0
        %1055 = vmatprep.mubr.f32.mxu0 0.0
        %1056 = vmatmul.mubr.f32.gmra.mrb[0].mxu0 %v886
        %v1057 = vpop.f32.mrb[0].mxu0
        %v1058 = vadd.f32 0.0, %v1057
        %v1059 = vpop.f32.mrb[0].mxu0
        %1060 = vmatprep.mubr.f32.mxu0 0.0
        %1061 = vmatmul.mubr.f32.gmra.mrb[0].mxu0 %v889
        %v1062 = vpop.f32.mrb[0].mxu0
        %v1063 = vadd.f32 0.0, %v1062
        %v1064 = vpop.f32.mrb[0].mxu0
        %1065 = vmatprep.mubr.f32.mxu0 0.0
        %1066 = vmatmul.mubr.f32.gmra.mrb[0].mxu0 %v892
        %v1067 = vpop.f32.mrb[0].mxu0
        %v1068 = vadd.f32 0.0, %v1067
        %v1069 = vpop.f32.mrb[0].mxu0
        %1070 = vmatprep.mubr.f32.mxu0 0.0
        %1071 = vmatmul.mubr.f32.gmra.mrb[0].mxu0 %v895
        %v1072 = vpop.f32.mrb[0].mxu0
        %v1073 = vadd.f32 0.0, %v1072
        %v1074 = vpop.f32.mrb[0].mxu0
        %1075 = vmatprep.mubr.f32.mxu0 0.0
        %1076 = vmatmul.mubr.f32.gmra.mrb[0].mxu0 %v898
        %v1077 = vpop.f32.mrb[0].mxu0
        %v1078 = vadd.f32 0.0, %v1077
        %v1079 = vpop.f32.mrb[0].mxu0
        %1080 = vmatprep.mubr.f32.mxu0 0.0
        %1081 = vmatmul.mubr.f32.gmra.mrb[0].mxu0 %v901
        %v1082 = vpop.f32.mrb[0].mxu0
        %v1083 = vadd.f32 0.0, %v1082
        %v1084 = vpop.f32.mrb[0].mxu0
        %1085 = vmatprep.mubr.f32.mxu0 0.0
        %1086 = vmatmul.mubr.f32.gmra.mrb[0].mxu0 %v904
        %v1087 = vpop.f32.mrb[0].mxu0
        %v1088 = vadd.f32 0.0, %v1087
        %v1089 = vpop.f32.mrb[0].mxu0
        %1090 = vmatprep.mubr.f32.mxu0 0.0
        %1091 = vmatmul.mubr.f32.gmra.mrb[0].mxu0 %v907
        %v1092 = vpop.f32.mrb[0].mxu0
        %v1093 = vadd.f32 0.0, %v1092
        %v1094 = vpop.f32.mrb[0].mxu0
        %1095 = vmatprep.mubr.f32.mxu0 0.0
        %1096 = vmatmul.mubr.f32.gmra.mrb[0].mxu0 %v910
        %v1097 = vpop.f32.mrb[0].mxu0
        %v1098 = vadd.f32 0.0, %v1097
        %v1099 = vpop.f32.mrb[0].mxu0
        %1100 = vmatprep.mubr.f32.mxu0 0.0
        %1101 = vmatmul.mubr.f32.gmra.mrb[0].mxu0 %v913
        %v1102 = vpop.f32.mrb[0].mxu0
        %v1103 = vadd.f32 0.0, %v1102
        %v1104 = vpop.f32.mrb[0].mxu0
        %1105 = vmatprep.mubr.f32.mxu0 0.0
        %1106 = vmatmul.mubr.f32.gmra.mrb[0].mxu0 %v916
        %v1107 = vpop.f32.mrb[0].mxu0
        %v1108 = vadd.f32 0.0, %v1107
        %v1109 = vpop.f32.mrb[0].mxu0
        %1110 = vdwg.mxu0
        %v1111 = vld [vmem:[%s223] sm:$0xff]
        %v1112 = vld [vmem:[%s223 + $0x8] sm:$0xff]
        %v1113 = vld [vmem:[%s223 + $0x10] sm:$0xff]
        %v1114 = vld [vmem:[%s223 + $0x18] sm:$0xff]
        %v1115 = vld [vmem:[%s223 + $0x20] sm:$0xff]
        %v1116 = vld [vmem:[%s223 + $0x28] sm:$0xff]
        %v1117 = vld [vmem:[%s223 + $0x30] sm:$0xff]
        %v1118 = vld [vmem:[%s223 + $0x38] sm:$0xff]
        %1119 = vmatprep.subr.mxu0 0.0
        %1120 = vmatpush1.msra.mxu0 %v1033
        %1121 = vmatprep.subr.mxu0 0.0
        %1122 = vmatpush1.msra.mxu0 %v1038
        %1123 = vmatprep.subr.mxu0 0.0
        %1124 = vmatpush1.msra.mxu0 %v1043
        %1125 = vmatprep.subr.mxu0 0.0
        %1126 = vmatpush1.msra.mxu0 %v1048
        %1127 = vmatprep.subr.mxu0 0.0
        %1128 = vmatpush1.msra.mxu0 %v1053
        %1129 = vmatprep.subr.mxu0 0.0
        %1130 = vmatpush1.msra.mxu0 %v1058
        %1131 = vmatprep.subr.mxu0 0.0
        %1132 = vmatpush1.msra.mxu0 %v1063
        %1133 = vmatprep.subr.mxu0 0.0
        %1134 = vmatpush1.msra.mxu0 %v1068
        %1135 = vmatprep.subr.mxu0 0.0
        %1136 = vmatpush1.msra.mxu0 %v1073
        %1137 = vmatprep.subr.mxu0 0.0
        %1138 = vmatpush1.msra.mxu0 %v1078
        %1139 = vmatprep.subr.mxu0 0.0
        %1140 = vmatpush1.msra.mxu0 %v1083
        %1141 = vmatprep.subr.mxu0 0.0
        %1142 = vmatpush1.msra.mxu0 %v1088
        %1143 = vmatprep.subr.mxu0 0.0
        %1144 = vmatpush1.msra.mxu0 %v1093
        %1145 = vmatprep.subr.mxu0 0.0
        %1146 = vmatpush1.msra.mxu0 %v1098
        %1147 = vmatprep.subr.mxu0 0.0
        %1148 = vmatpush1.msra.mxu0 %v1103
        %1149 = vmatprep.subr.mxu0 0.0
        %1150 = vmatpush1.msra.mxu0 %v1108
        %1151 = vmatprep.subr.mxu0 0.0
        %1152 = vmatpush1.msra.mxu0 0.0
        %1153 = vmatprep.subr.mxu0 0.0
        %1154 = vmatpush1.msra.mxu0 0.0
        %1155 = vmatprep.subr.mxu0 0.0
        %1156 = vmatpush1.msra.mxu0 0.0
        %1157 = vmatprep.subr.mxu0 0.0
        %1158 = vmatpush1.msra.mxu0 0.0
        %1159 = vmatprep.subr.mxu0 0.0
        %1160 = vmatpush1.msra.mxu0 0.0
        %1161 = vmatprep.subr.mxu0 0.0
        %1162 = vmatpush1.msra.mxu0 0.0
        %1163 = vmatprep.subr.mxu0 0.0
        %1164 = vmatpush1.msra.mxu0 0.0
        %1165 = vmatprep.subr.mxu0 0.0
        %1166 = vmatpush1.msra.mxu0 0.0
        %1167 = vmatprep.subr.mxu0 0.0
        %1168 = vmatpush1.msra.mxu0 0.0
        %1169 = vmatprep.subr.mxu0 0.0
        %1170 = vmatpush1.msra.mxu0 0.0
        %1171 = vmatprep.subr.mxu0 0.0
        %1172 = vmatpush1.msra.mxu0 0.0
        %1173 = vmatprep.subr.mxu0 0.0
        %1174 = vmatpush1.msra.mxu0 0.0
        %1175 = vmatprep.subr.mxu0 0.0
        %1176 = vmatpush1.msra.mxu0 0.0
        %1177 = vmatprep.subr.mxu0 0.0
        %1178 = vmatpush1.msra.mxu0 0.0
        %1179 = vmatprep.subr.mxu0 0.0
        %1180 = vmatpush1.msra.mxu0 0.0
        %1181 = vmatprep.subr.mxu0 0.0
        %1182 = vmatpush1.msra.mxu0 0.0
        %1183 = vmatprep.mubr.f32.mxu0 0.0
        %1184 = vmatmul.mubr.f32.gmra.mrb[0].mxu0 %v1111
        %v1185 = vpop.f32.mrb[0].mxu0
        %v1186 = vadd.f32 0.0, %v1185
        %v1187 = vpop.f32.mrb[0].mxu0
        %1188 = vmatprep.mubr.f32.mxu0 0.0
        %1189 = vmatmul.mubr.f32.gmra.mrb[0].mxu0 %v1112
        %v1190 = vpop.f32.mrb[0].mxu0
        %v1191 = vadd.f32 0.0, %v1190
        %v1192 = vpop.f32.mrb[0].mxu0
        %1193 = vmatprep.mubr.f32.mxu0 0.0
        %1194 = vmatmul.mubr.f32.gmra.mrb[0].mxu0 %v1113
        %v1195 = vpop.f32.mrb[0].mxu0
        %v1196 = vadd.f32 0.0, %v1195
        %v1197 = vpop.f32.mrb[0].mxu0
        %1198 = vmatprep.mubr.f32.mxu0 0.0
        %1199 = vmatmul.mubr.f32.gmra.mrb[0].mxu0 %v1114
        %v1200 = vpop.f32.mrb[0].mxu0
        %v1201 = vadd.f32 0.0, %v1200
        %v1202 = vpop.f32.mrb[0].mxu0
        %1203 = vmatprep.mubr.f32.mxu0 0.0
        %1204 = vmatmul.mubr.f32.gmra.mrb[0].mxu0 %v1115
        %v1205 = vpop.f32.mrb[0].mxu0
        %v1206 = vadd.f32 0.0, %v1205
        %v1207 = vpop.f32.mrb[0].mxu0
        %1208 = vmatprep.mubr.f32.mxu0 0.0
        %1209 = vmatmul.mubr.f32.gmra.mrb[0].mxu0 %v1116
        %v1210 = vpop.f32.mrb[0].mxu0
        %v1211 = vadd.f32 0.0, %v1210
        %v1212 = vpop.f32.mrb[0].mxu0
        %1213 = vmatprep.mubr.f32.mxu0 0.0
        %1214 = vmatmul.mubr.f32.gmra.mrb[0].mxu0 %v1117
        %v1215 = vpop.f32.mrb[0].mxu0
        %v1216 = vadd.f32 0.0, %v1215
        %v1217 = vpop.f32.mrb[0].mxu0
        %1218 = vmatprep.mubr.f32.mxu0 0.0
        %1219 = vmatmul.mubr.f32.gmra.mrb[0].mxu0 %v1118
        %v1220 = vpop.f32.mrb[0].mxu0
        %v1221 = vadd.f32 0.0, %v1220
        %v1222 = vpop.f32.mrb[0].mxu0
        %1223 = vdwg.mxu0
        %1224 = vst [vmem:[%s218] sm:$0xff] %v1186
        %1225 = vst [vmem:[%s218 + $0x8] sm:$0xff] %v1191
        %1226 = vst [vmem:[%s218 + $0x10] sm:$0xff] %v1196
        %1227 = vst [vmem:[%s218 + $0x18] sm:$0xff] %v1201
        %1228 = vst [vmem:[%s218 + $0x20] sm:$0xff] %v1206
        %1229 = vst [vmem:[%s218 + $0x28] sm:$0xff] %v1211
        %1230 = vst [vmem:[%s218 + $0x30] sm:$0xff] %v1216
        %1231 = vst [vmem:[%s218 + $0x38] sm:$0xff] %v1221
        %s1232 = sand.u32 %s137, 1
        %s1233 = scalar_lea.sflag [#allocation3], %s1232
        %s1234 = sand.u32 %s137, 1
        %s1235 = smul.addr %s1234, 64
        %s1236 = scalar_lea.vmem [#allocation2], %s1235
        // Predicated region
        $region41: #{tpu_custom_call.1} parent=39 // pred_check
          %p1237 = pneg %p147
        $region42: #{tpu_custom_call.1} parent=39 // pred_check_branch
          %1239 = sbr.rel (%p1237) target = $region44
        $region43: #{tpu_custom_call.1} parent=39 // pred_region
          %s1240 = smul.u32 8, %s19
          %s1242 = ssub.s32 1024, 1024
          %1243 = vsyncadd %s1233, %s1242
          %s1244 = smul.addr %s1240, 128
          %s1245 = scalar_lea.hbm %s5, %s1244
          %s1246 = sshll.u32 %s1236, 4
          %s1247 = int_to_ptr.vmem [resolvable:$true] %s1246
          %1252 = dma.vmem_to_hbm [thread:$0]  %s1247, 1024, %s1245, %s1233, 128, 128, 8
        $region44: #{tpu_custom_call.1} parent=39 // pred_fallthru
          _
      $region40: #{tpu_custom_call.1} parent=5 // pred_fallthru
        _
      %p1253 = scmp.le.s32.totalorder 2, %s14
      // Predicated region
      $region45: #{tpu_custom_call.1} parent=5 // pred_check
        %p1254 = pneg %p1253
      $region46: #{tpu_custom_call.1} parent=5 // pred_check_branch
        %1256 = sbr.rel (%p1254) target = $region48
      $region47: #{tpu_custom_call.1} parent=5 // pred_region
        %s1257 = ssub.s32 %s14, 2
        // Predicated region
        $region49: #{tpu_custom_call.1} parent=47 // pred_check
          %p1258 = pneg %p153
        $region50: #{tpu_custom_call.1} parent=47 // pred_check_branch
          %1260 = sbr.rel (%p1258) target = $region52
        $region51: #{tpu_custom_call.1} parent=47 // pred_region
          %s1261 = sand.u32 %s138, 1
          %s1262 = scalar_lea.sflag [#allocation3], %s1261
          %s1263 = sand.u32 %s138, 1
          %s1264 = smul.addr %s1263, 64
          %s1265 = scalar_lea.vmem [#allocation2], %s1264
          %1266 = dma.done %s1262, 1024
        $region52: #{tpu_custom_call.1} parent=47 // pred_fallthru
          _
      $region48: #{tpu_custom_call.1} parent=5 // pred_fallthru
        _
    $region6: #{tpu_custom_call.1} parent=1 // loop_footer
      %s18 = sadd.s32 1, %s14
    $region7: #{tpu_custom_call.1} parent=1 // loop_footer_branch
      %13 = sbr.rel target = $region3
    $region8: #{tpu_custom_call.1} parent=1 // loop_exit
      _
    %1267 = vsyncpa [#allocation3], 1
    %s1268 = scalar_lea.sflag [#allocation3], 1
    %1269 = vsyncpa %s1268, 1

</llo_original>
